<compile_context>
chip_gen: v5e
topology: v5e:2x2
jax: 0.10.0
libtpu: 0.0.40
codegen_flags: <defaults>
</compile_context>

<pallas_src>
import jax
import jax.numpy as jnp
from jax.experimental import pallas as pl
from jax.experimental.pallas import tpu as pltpu


# ----------------------------------------------------------------------------
# Kernel body (shared by the single-block and the layer-batched entry points;
# in the batched case the leading layer dim is squeezed away by the BlockSpec).
# ----------------------------------------------------------------------------
def _moe_fused_kernel(x_ref, w_ref, o1_ref, o2_ref):
    """relu(x @ [moe1 | moe2]) on the MXU.

    One fused matmul over the pre-concatenated (E, 2*O) bf16 weight, f32
    accumulation, ReLU, then two lane-aligned (B, O) stores - no wrapper
    slicing needed afterwards.
    """
    x_bf16 = x_ref[...].astype(jnp.bfloat16)           # in-kernel cast
    acc = jnp.dot(x_bf16, w_ref[...], preferred_element_type=jnp.float32)
    acc = jnp.maximum(acc, 0.0)
    o = o1_ref.shape[-1]                                # static split point
    o1_ref[...] = acc[:, :o].astype(o1_ref.dtype)
    o2_ref[...] = acc[:, o:].astype(o2_ref.dtype)


# ----------------------------------------------------------------------------
# Init-time weight fusion (NOT in the per-call hot path).
# ----------------------------------------------------------------------------
def fuse_moe_weights(moe1, moe2):
    """(E, O) + (E, O) -> (E, 2*O) bf16, done once at parameter-init time."""
    return jnp.concatenate([moe1, moe2], axis=1).astype(jnp.bfloat16)


# ----------------------------------------------------------------------------
# Single MoEBlock forward (module semantics).
# ----------------------------------------------------------------------------
def moe_block_pallas(x, w_fused):
    """Compute (relu(x @ moe1), relu(x @ moe2)) with one fused pallas_call.

    x:       (B, E) float32
    w_fused: (E, 2*O) bfloat16 (pre-fused, pre-cast at init time)
    returns (o1, o2), each (B, O) float32
    """
    B, E = x.shape
    E2, O2 = w_fused.shape
    assert E == E2 and O2 % 2 == 0
    O = O2 // 2

    vmem = pltpu.MemorySpace.VMEM
    o1, o2 = pl.pallas_call(
        _moe_fused_kernel,
        out_shape=(
            jax.ShapeDtypeStruct((B, O), jnp.float32),
            jax.ShapeDtypeStruct((B, O), jnp.float32),
        ),
        # Whole-array, VMEM-resident operands; no grid -> no double-buffering
        # or pipeline prologue/epilogue for a single-shot tiny matmul.
        in_specs=[
            pl.BlockSpec(memory_space=vmem),
            pl.BlockSpec(memory_space=vmem),
        ],
        out_specs=(
            pl.BlockSpec(memory_space=vmem),
            pl.BlockSpec(memory_space=vmem),
        ),
    )(x, w_fused)
    return o1, o2


def moe_block_forward(x_and_gx, w_fused):
    """Full MoEBlock.forward semantics: (x, gx) -> (x, gx + [o1, o2])."""
    x, gx = x_and_gx
    o1, o2 = moe_block_pallas(x, w_fused)
    return (x, list(gx) + [o1, o2])


# ----------------------------------------------------------------------------
# Layer-batched path: L independent MoE blocks in ONE gridded pallas_call.
# Amortizes launch/DMA-setup overhead and shards layers across v7x's 2 TCs.
# ----------------------------------------------------------------------------
def moe_blocks_batched(xs, ws_fused):
    """xs: (L, B, E) f32, ws_fused: (L, E, 2*O) bf16 -> (o1s, o2s) (L, B, O) f32."""
    L, B, E = xs.shape
    L2, E2, O2 = ws_fused.shape
    assert L == L2 and E == E2 and O2 % 2 == 0
    O = O2 // 2

    grid_spec = pltpu.PrefetchScalarGridSpec(
        num_scalar_prefetch=0,
        grid=(L,),
        # Leading (layer) dim is squeezed -> kernel body sees the same 2-D
        # refs as the single-block path.  BlockSpec double-buffers the 64 KiB
        # per-layer bf16 weight DMA behind the matmul of the previous layer.
        in_specs=[
            pl.BlockSpec((None, B, E), lambda l: (l, 0, 0)),
            pl.BlockSpec((None, E, O2), lambda l: (l, 0, 0)),
        ],
        out_specs=(
            pl.BlockSpec((None, B, O), lambda l: (l, 0, 0)),
            pl.BlockSpec((None, B, O), lambda l: (l, 0, 0)),
        ),
    )
    o1s, o2s = pl.pallas_call(
        _moe_fused_kernel,
        out_shape=(
            jax.ShapeDtypeStruct((L, B, O), jnp.float32),
            jax.ShapeDtypeStruct((L, B, O), jnp.float32),
        ),
        grid_spec=grid_spec,
        # Layer axis is independent -> parallel (2x on v7x's 2 TensorCores;
        # neutral on single-TC v5e/v6e).
        compiler_params=pltpu.CompilerParams(
            dimension_semantics=("parallel",)),
    )(xs, ws_fused)
    return o1s, o2s


def _kaiming_normal(key, shape):
    # PyTorch kaiming_normal_ default: fan_in = shape[1] for 2D, gain=sqrt(2).
    fan_in = shape[1]
    std = (2.0 / fan_in) ** 0.5
    return std * jax.random.normal(key, shape, dtype=jnp.float32)


if __name__ == "__main__":
    # Small, TPU-friendly shapes consistent with the module:
    #   batch=8, embedding_size=128, output=128
    B, E, O = 8, 128, 128
    L = 4  # number of MoE layers for the batched demo

    key = jax.random.PRNGKey(0)
    kx, k1, k2, kl = jax.random.split(key, 4)

    x = jax.random.normal(kx, (B, E), dtype=jnp.float32)
    moe1 = _kaiming_normal(k1, (E, O))
    moe2 = _kaiming_normal(k2, (E, O))

    # ---- single MoEBlock forward (module semantics) ----
    w_fused = fuse_moe_weights(moe1, moe2)   # init-time, not in the hot path
    x_out, gx_out = moe_block_forward((x, []), w_fused)

    jax.block_until_ready(x_out)
    for t in gx_out:
        jax.block_until_ready(t)

    # Reference check in plain JAX (f32).  Operands are bf16 inside the kernel,
    # so the tolerance is loosened accordingly (accumulation is still f32).
    ref1 = jnp.maximum(x @ moe1, 0.0)
    ref2 = jnp.maximum(x @ moe2, 0.0)
    assert x_out.shape == (B, E)
    assert len(gx_out) == 2
    assert gx_out[0].shape == (B, O) and gx_out[0].dtype == jnp.float32
    assert gx_out[1].shape == (B, O) and gx_out[1].dtype == jnp.float32
    assert jnp.allclose(gx_out[0], ref1, atol=2e-2, rtol=2e-2)
    assert jnp.allclose(gx_out[1], ref2, atol=2e-2, rtol=2e-2)
    assert jnp.allclose(x_out, x)

    # ---- layer-batched path: L independent MoE blocks, one gridded call ----
    keys = jax.random.split(kl, 3 * L)
    xs = jnp.stack([jax.random.normal(keys[3 * l], (B, E), dtype=jnp.float32)
                    for l in range(L)])
    moe1s = jnp.stack([_kaiming_normal(keys[3 * l + 1], (E, O)) for l in range(L)])
    moe2s = jnp.stack([_kaiming_normal(keys[3 * l + 2], (E, O)) for l in range(L)])
    ws_fused = jnp.concatenate([moe1s, moe2s], axis=2).astype(jnp.bfloat16)

    b1, b2 = moe_blocks_batched(xs, ws_fused)
    jax.block_until_ready(b1)
    jax.block_until_ready(b2)
    assert b1.shape == (L, B, O) and b2.shape == (L, B, O)
    for l in range(L):
        r1 = jnp.maximum(xs[l] @ moe1s[l], 0.0)
        r2 = jnp.maximum(xs[l] @ moe2s[l], 0.0)
        assert jnp.allclose(b1[l], r1, atol=2e-2, rtol=2e-2)
        assert jnp.allclose(b2[l], r2, atol=2e-2, rtol=2e-2)

    print("KERNEL_OK")
</pallas_src>

<mosaic_0001>
module attributes {stable_mosaic.version = 11 : i64} {
  func.func @_moe_fused_kernel(%arg0: memref<8x128xf32, #tpu.memory_space<vmem>>, %arg1: memref<128x256xbf16, #tpu.memory_space<vmem>>, %arg2: memref<8x128xf32, #tpu.memory_space<vmem>>, %arg3: memref<8x128xf32, #tpu.memory_space<vmem>>) attributes {dimension_semantics = [], scalar_prefetch = 0 : i64, scratch_operands = 0 : i64, tpu.core_type = #tpu.core_type<tc>} {
    %c0 = arith.constant 0 : index
    %c0_0 = arith.constant 0 : index
    %0 = vector.load %arg0[%c0, %c0_0] : memref<8x128xf32, #tpu.memory_space<vmem>>, vector<8x128xf32>
    %1 = arith.truncf %0 : vector<8x128xf32> to vector<8x128xbf16>
    %c0_1 = arith.constant 0 : index
    %c0_2 = arith.constant 0 : index
    %2 = vector.load %arg1[%c0_1, %c0_2] : memref<128x256xbf16, #tpu.memory_space<vmem>>, vector<128x256xbf16>
    %cst = arith.constant dense<0.000000e+00> : vector<8x256xf32>
    %3 = tpu.matmul %1, %2, %cst {dimension_numbers = #tpu.dot_dimension_numbers<[1], [0], [0], [1], [0, 0, 1, 1], [], []>} : vector<8x128xbf16>, vector<128x256xbf16>, vector<8x256xf32> -> vector<8x256xf32>
    %cst_3 = arith.constant 0.000000e+00 : f32
    %4 = vector.broadcast %cst_3 : f32 to vector<8x256xf32>
    %5 = arith.maximumf %3, %4 : vector<8x256xf32>
    %6 = vector.extract_strided_slice %5 {offsets = [0, 0], sizes = [8, 128], strides = [1, 1]} : vector<8x256xf32> to vector<8x128xf32>
    %c0_4 = arith.constant 0 : index
    %c0_5 = arith.constant 0 : index
    %7 = vector.load %arg2[%c0_4, %c0_5] : memref<8x128xf32, #tpu.memory_space<vmem>>, vector<8x128xf32>
    tpu.vector_store %arg2[%c0_4, %c0_5], %6 {strides = array<i32>} : memref<8x128xf32, #tpu.memory_space<vmem>>, vector<8x128xf32>,
    %8 = vector.extract_strided_slice %5 {offsets = [0, 128], sizes = [8, 128], strides = [1, 1]} : vector<8x256xf32> to vector<8x128xf32>
    %c0_6 = arith.constant 0 : index
    %c0_7 = arith.constant 0 : index
    %9 = vector.load %arg3[%c0_6, %c0_7] : memref<8x128xf32, #tpu.memory_space<vmem>>, vector<8x128xf32>
    tpu.vector_store %arg3[%c0_6, %c0_7], %8 {strides = array<i32>} : memref<8x128xf32, #tpu.memory_space<vmem>>, vector<8x128xf32>,
    return
  }
}

</mosaic_0001>

<llo_original>
// kernel: tpu_custom_call.1
$region0: #{tpu_custom_call.1}
  #allocation0 [shape = 'u32[]', space=smem, size = 0x4, offset = 0x4, fixed_abs, tag = 'smem constant byte address 0x4 - core index']
  #allocation1 [shape = 'u32[72,128]{1,0:T(1,128)}', space=vmem, size = 0x9000, scoped, tag = 'internal scratch']
  %s0 = inlined_call_operand.hbm [shape: f32[8,128], index: 0, kind: input, shape index: {}]
  %s1 = inlined_call_operand.hbm [shape: bf16[128,256], index: 1, kind: input, shape index: {}]
  %s2 = inlined_call_operand.hbm [shape: f32[8,128], index: 2, kind: output, shape index: {0}]
  %s3 = inlined_call_operand.hbm [shape: f32[8,128], index: 3, kind: output, shape index: {1}]
  %4 = xla_tuple %s2, %s3
  %s5 = sld [smem:[#allocation0]]
  $region34: #{tpu_custom_call.1} parent=0
    _
  %s7 = ssub.s32 1, %s5
  %s8 = scalar_select 0, %s7, %s5
  $region1: #{tpu_custom_call.1} parent=0
    #allocation2 [shape = 'u8[4096]{0}', space=vmem, size = 0x1000, scoped, tag = 'input window, operand 0, single buffered']
    #allocation3 [shape = 's32[1]{0}', space=sflag, size = 0x4, scoped, tag = 'scoped memory for tpu_custom_call.1']
    #allocation4 [shape = 's32[1]{0}', space=sflag, size = 0x4, scoped, tag = 'scoped memory for tpu_custom_call.1']
    #allocation5 [shape = 'u8[65536]{0}', space=vmem, size = 0x10000, scoped, tag = 'input window, operand 1, single buffered']
    #allocation6 [shape = 's32[1]{0}', space=sflag, size = 0x4, scoped, tag = 'scoped memory for tpu_custom_call.1']
    #allocation7 [shape = 'u8[4096]{0}', space=vmem, size = 0x1000, scoped, tag = 'output window, operand 0, single buffered']
    #allocation8 [shape = 'u8[4096]{0}', space=vmem, size = 0x1000, scoped, tag = 'output window, operand 1, single buffered']
    #allocation9 [shape = 's32[1]{0}', space=sflag, size = 0x4, scoped, tag = 'scoped memory for tpu_custom_call.1']
    %9 = vsyncpa [#allocation3], 0
    %10 = vsyncpa [#allocation6], 0
    %11 = vsyncpa [#allocation4], 0
    %12 = vsyncpa [#allocation9], 0
    // Predicated region
    $region2: #{tpu_custom_call.1} parent=1 // pred_check
      _
    $region3: #{tpu_custom_call.1} parent=1 // pred_check_branch
      %14 = sbr.rel (0) target = $region5
    $region4: #{tpu_custom_call.1} parent=1 // pred_region
      %16 = vsyncadd [#allocation3], 0
      %s18 = sshll.u32 %s0, 4
      %s19 = int_to_ptr.hbm [resolvable:$true] %s18
      %s20 = sshll.u32 [#allocation2], 4
      %s21 = int_to_ptr.vmem [resolvable:$true] %s20
      %23 = dma.hbm_to_vmem [thread:$0]  %s19, 128, %s21, [#allocation3]
    $region5: #{tpu_custom_call.1} parent=1 // pred_fallthru
      _
    // Predicated region
    $region6: #{tpu_custom_call.1} parent=1 // pred_check
      _
    $region7: #{tpu_custom_call.1} parent=1 // pred_check_branch
      %25 = sbr.rel (0) target = $region9
    $region8: #{tpu_custom_call.1} parent=1 // pred_region
      %27 = vsyncadd [#allocation6], 0
      %s28 = sshll.u32 %s1, 4
      %s29 = int_to_ptr.hbm [resolvable:$true] %s28
      %s30 = sshll.u32 [#allocation5], 4
      %s31 = int_to_ptr.vmem [resolvable:$true] %s30
      %36 = dma.hbm_to_vmem [thread:$0]  %s29, 2048, %s31, [#allocation6], 128, 128, 8
    $region9: #{tpu_custom_call.1} parent=1 // pred_fallthru
      _
    // Predicated region
    $region10: #{tpu_custom_call.1} parent=1 // pred_check
      _
    $region11: #{tpu_custom_call.1} parent=1 // pred_check_branch
      %38 = sbr.rel (0) target = $region13
    $region12: #{tpu_custom_call.1} parent=1 // pred_region
      %40 = dma.done [#allocation3], 128
    $region13: #{tpu_custom_call.1} parent=1 // pred_fallthru
      _
    // Predicated region
    $region14: #{tpu_custom_call.1} parent=1 // pred_check
      _
    $region15: #{tpu_custom_call.1} parent=1 // pred_check_branch
      %42 = sbr.rel (0) target = $region17
    $region16: #{tpu_custom_call.1} parent=1 // pred_region
      %44 = dma.done [#allocation6], 2048
    $region17: #{tpu_custom_call.1} parent=1 // pred_fallthru
      _
    %v45 = vld [vmem:[#allocation2] sm:$0xff]
    %v46 = vpack.c.bf16 %v45, %v45
    %v47 = vld [vmem:[#allocation5] sm:$0xff]
    %v48 = vld [vmem:[#allocation5 + $0x8] sm:$0xff]
    %v49 = vld [vmem:[#allocation5 + $0x10] sm:$0xff]
    %v50 = vld [vmem:[#allocation5 + $0x18] sm:$0xff]
    %v51 = vld [vmem:[#allocation5 + $0x20] sm:$0xff]
    %v52 = vld [vmem:[#allocation5 + $0x28] sm:$0xff]
    %v53 = vld [vmem:[#allocation5 + $0x30] sm:$0xff]
    %v54 = vld [vmem:[#allocation5 + $0x38] sm:$0xff]
    %v55 = vld [vmem:[#allocation5 + $0x40] sm:$0xff]
    %v56 = vld [vmem:[#allocation5 + $0x48] sm:$0xff]
    %v57 = vld [vmem:[#allocation5 + $0x50] sm:$0xff]
    %v58 = vld [vmem:[#allocation5 + $0x58] sm:$0xff]
    %v59 = vld [vmem:[#allocation5 + $0x60] sm:$0xff]
    %v60 = vld [vmem:[#allocation5 + $0x68] sm:$0xff]
    %v61 = vld [vmem:[#allocation5 + $0x70] sm:$0xff]
    %v62 = vld [vmem:[#allocation5 + $0x78] sm:$0xff]
    %v79 = vunpack.c.l.b16 %v47
    %v80 = vunpack.c.h.b16 %v47
    %v81 = vunpack.c.l.b16 %v48
    %v82 = vunpack.c.h.b16 %v48
    %v83 = vunpack.c.l.b16 %v49
    %v84 = vunpack.c.h.b16 %v49
    %v85 = vunpack.c.l.b16 %v50
    %v86 = vunpack.c.h.b16 %v50
    %v87 = vunpack.c.l.b16 %v51
    %v88 = vunpack.c.h.b16 %v51
    %v89 = vunpack.c.l.b16 %v52
    %v90 = vunpack.c.h.b16 %v52
    %v91 = vunpack.c.l.b16 %v53
    %v92 = vunpack.c.h.b16 %v53
    %v93 = vunpack.c.l.b16 %v54
    %v94 = vunpack.c.h.b16 %v54
    %v95 = vunpack.c.l.b16 %v55
    %v96 = vunpack.c.h.b16 %v55
    %v97 = vunpack.c.l.b16 %v56
    %v98 = vunpack.c.h.b16 %v56
    %v99 = vunpack.c.l.b16 %v57
    %v100 = vunpack.c.h.b16 %v57
    %v101 = vunpack.c.l.b16 %v58
    %v102 = vunpack.c.h.b16 %v58
    %v103 = vunpack.c.l.b16 %v59
    %v104 = vunpack.c.h.b16 %v59
    %v105 = vunpack.c.l.b16 %v60
    %v106 = vunpack.c.h.b16 %v60
    %v107 = vunpack.c.l.b16 %v61
    %v108 = vunpack.c.h.b16 %v61
    %v109 = vunpack.c.l.b16 %v62
    %v110 = vunpack.c.h.b16 %v62
    %v111 = vpack.c.b16 %v81, %v79
    %v112 = vpack.c.b16 %v82, %v80
    %v113 = vpack.c.b16 %v85, %v83
    %v114 = vpack.c.b16 %v86, %v84
    %v115 = vpack.c.b16 %v89, %v87
    %v116 = vpack.c.b16 %v90, %v88
    %v117 = vpack.c.b16 %v93, %v91
    %v118 = vpack.c.b16 %v94, %v92
    %v119 = vpack.c.b16 %v97, %v95
    %v120 = vpack.c.b16 %v98, %v96
    %v121 = vpack.c.b16 %v101, %v99
    %v122 = vpack.c.b16 %v102, %v100
    %v123 = vpack.c.b16 %v105, %v103
    %v124 = vpack.c.b16 %v106, %v104
    %v125 = vpack.c.b16 %v109, %v107
    %v126 = vpack.c.b16 %v110, %v108
    %143 = vmatpush.bf16.msra.mxu0 %v125
    %144 = vmatpush.bf16.msra.mxu0 %v123
    %145 = vmatpush.bf16.msra.mxu0 %v121
    %146 = vmatpush.bf16.msra.mxu0 %v119
    %147 = vmatpush.bf16.msra.mxu0 %v117
    %148 = vmatpush.bf16.msra.mxu0 %v115
    %149 = vmatpush.bf16.msra.mxu0 %v113
    %150 = vmatpush.bf16.msra.mxu0 %v111
    %151 = vmatmul.bf16.gmra.mxu0 %v46
    %v152 = vpop.f32.mrf.mxu0
    %v153 = vadd.f32 0.0, %v152
    %v154 = vpop.f32.mrf.mxu0
    %155 = vdwg.mxu0
    %156 = vmatpush.bf16.msra.mxu0 %v126
    %157 = vmatpush.bf16.msra.mxu0 %v124
    %158 = vmatpush.bf16.msra.mxu0 %v122
    %159 = vmatpush.bf16.msra.mxu0 %v120
    %160 = vmatpush.bf16.msra.mxu0 %v118
    %161 = vmatpush.bf16.msra.mxu0 %v116
    %162 = vmatpush.bf16.msra.mxu0 %v114
    %163 = vmatpush.bf16.msra.mxu0 %v112
    %164 = vmatmul.bf16.gmra.mxu0 %v46
    %v165 = vpop.f32.mrf.mxu0
    %v166 = vadd.f32 0.0, %v165
    %v167 = vpop.f32.mrf.mxu0
    %168 = vdwg.mxu0
    %v169 = vmax.f32 %v153, 0.0
    %v170 = vmax.f32 %v166, 0.0
    %171 = vst [vmem:[#allocation7] sm:$0xff] %v169
    %172 = vst [vmem:[#allocation8] sm:$0xff] %v170
    // Predicated region
    $region18: #{tpu_custom_call.1} parent=1 // pred_check
      _
    $region19: #{tpu_custom_call.1} parent=1 // pred_check_branch
      %174 = sbr.rel (0) target = $region21
    $region20: #{tpu_custom_call.1} parent=1 // pred_region
      %176 = vsyncadd [#allocation4], 0
      %s178 = sshll.u32 [#allocation7], 4
      %s179 = int_to_ptr.vmem [resolvable:$true] %s178
      %s180 = sshll.u32 %s2, 4
      %s181 = int_to_ptr.hbm [resolvable:$true] %s180
      %183 = dma.vmem_to_hbm [thread:$0]  %s179, 128, %s181, [#allocation4]
    $region21: #{tpu_custom_call.1} parent=1 // pred_fallthru
      _
    // Predicated region
    $region22: #{tpu_custom_call.1} parent=1 // pred_check
      _
    $region23: #{tpu_custom_call.1} parent=1 // pred_check_branch
      %185 = sbr.rel (0) target = $region25
    $region24: #{tpu_custom_call.1} parent=1 // pred_region
      %187 = vsyncadd [#allocation9], 0
      %s189 = sshll.u32 [#allocation8], 4
      %s190 = int_to_ptr.vmem [resolvable:$true] %s189
      %s191 = sshll.u32 %s3, 4
      %s192 = int_to_ptr.hbm [resolvable:$true] %s191
      %194 = dma.vmem_to_hbm [thread:$0]  %s190, 128, %s192, [#allocation9]
    $region25: #{tpu_custom_call.1} parent=1 // pred_fallthru
      _
    // Predicated region
    $region26: #{tpu_custom_call.1} parent=1 // pred_check
      _
    $region27: #{tpu_custom_call.1} parent=1 // pred_check_branch
      %196 = sbr.rel (0) target = $region29
    $region28: #{tpu_custom_call.1} parent=1 // pred_region
      %198 = dma.done [#allocation4], 128
    $region29: #{tpu_custom_call.1} parent=1 // pred_fallthru
      _
    // Predicated region
    $region30: #{tpu_custom_call.1} parent=1 // pred_check
      _
    $region31: #{tpu_custom_call.1} parent=1 // pred_check_branch
      %200 = sbr.rel (0) target = $region33
    $region32: #{tpu_custom_call.1} parent=1 // pred_region
      %202 = dma.done [#allocation9], 128
    $region33: #{tpu_custom_call.1} parent=1 // pred_fallthru
      _
    %203 = vsyncpa [#allocation3], 1
    %204 = vsyncpa [#allocation6], 1
    %205 = vsyncpa [#allocation4], 1
    %206 = vsyncpa [#allocation9], 1

</llo_original>
